<compile_context>
chip_gen: v7x
topology: tpu7x:2x2x1
jax: 0.10.0
libtpu: 0.0.40
codegen_flags: <defaults>
</compile_context>

<pallas_src>
import functools

import jax
import jax.numpy as jnp
from jax import lax
from jax.experimental import pallas as pl
from jax.experimental.pallas import tpu as pltpu

SIGMA = 0.1
IS_RELATIVE_DETACH = True  # gradient-only flag; forward value is identical
# TODO(synk): is_relative_detach / detach() only changes gradients; a
# custom_vjp would be needed for training-time backprop parity (forward exact).

_INV_2_24 = 1.0 / 16777216.0          # 2**-24
_TWO_PI = 6.283185307179586


def _bits_to_f24(bits):
    """Low 24 bits of an int32/uint32 field -> float32 integer in [0, 2^24)."""
    return jnp.bitwise_and(bits, 0xFFFFFF).astype(jnp.int32).astype(jnp.float32)


def _hash32(x):
    """lowbias32 integer mixer (portable non-TPU path only)."""
    x = jnp.bitwise_xor(x, x >> jnp.uint32(16))
    x = x * jnp.uint32(0x7FEB352D)
    x = jnp.bitwise_xor(x, x >> jnp.uint32(15))
    x = x * jnp.uint32(0x846CA68B)
    x = jnp.bitwise_xor(x, x >> jnp.uint32(16))
    return x


def _portable_bits(seed, pid, block_rows, shape):
    """Counter-based random bits usable on any backend (CPU/interpret path)."""
    _, ncols = shape
    row = lax.broadcasted_iota(jnp.uint32, shape, 0)
    col = lax.broadcasted_iota(jnp.uint32, shape, 1)
    row = row + pid.astype(jnp.uint32) * jnp.uint32(block_rows)
    idx = row * jnp.uint32(ncols) + col                  # globally unique
    base = idx * jnp.uint32(2) + seed.astype(jnp.uint32) * jnp.uint32(0x9E3779B9)
    return _hash32(base), _hash32(base + jnp.uint32(1))


def _gaussian_noise_kernel(seed_ref, x_ref, o_ref, *, sigma, block_rows,
                           use_hw_prng):
    pid = pl.program_id(0)
    bm, cols = x_ref.shape
    paired = (cols % 2 == 0) and (cols >= 2)
    half = cols // 2 if paired else cols

    if use_hw_prng:
        # Fold the grid index into the seed -> independent stream per tile.
        pltpu.prng_seed(seed_ref[0], pid)
        bits1 = pltpu.prng_random_bits((bm, half))
        bits2 = pltpu.prng_random_bits((bm, half))
    else:
        bits1, bits2 = _portable_bits(seed_ref[0], pid, block_rows, (bm, half))

    # Box-Muller: one (u1, u2) pair -> two standard normals (cos & sin branch),
    # so PRNG draws and log/sqrt are amortized over two output elements.
    m1 = _bits_to_f24(bits1)
    m2 = _bits_to_f24(bits2)
    u1 = (m1 + 1.0) * jnp.float32(_INV_2_24)            # (0, 1]: log is finite
    r = jnp.sqrt(-2.0 * jnp.log(u1))
    theta = jnp.float32(_TWO_PI * _INV_2_24) * m2       # 2*pi*u2, u2 in [0, 1)
    z_cos = r * jnp.cos(theta)
    if paired:
        z_sin = r * jnp.sin(theta)
        z = jnp.concatenate([z_cos, z_sin], axis=-1)
    else:
        z = z_cos

    xf = x_ref[...].astype(jnp.float32)
    # out = x + z * (sigma * detach(x)) == x * (1 + sigma * z)
    o_ref[...] = (xf * (1.0 + jnp.float32(sigma) * z)).astype(o_ref.dtype)


def gaussian_noise(x, seed, *, sigma=SIGMA, training=True):
    """Apply relative Gaussian noise, matching GaussianNoise.forward (NCHW)."""
    if (not training) or sigma == 0:
        return x

    orig_shape = x.shape
    n, c, h, w = orig_shape
    rows, cols = n * c, h * w
    x2d = x.reshape(rows, cols)
    seed_arr = jnp.asarray([seed], dtype=jnp.int32)

    # Tile the leading (sublane) dim; keep the lane-dense last dim whole.
    target_elems = 1 << 20                      # ~4 MiB of f32 per block
    if rows * cols <= target_elems or rows <= 8:
        block_rows = rows
    else:
        block_rows = max(8, min(rows, (target_elems // max(cols, 1)) // 8 * 8))
    grid = (pl.cdiv(rows, block_rows),)

    use_hw_prng = jax.default_backend() == "tpu"
    kernel = functools.partial(
        _gaussian_noise_kernel, sigma=float(sigma), block_rows=block_rows,
        use_hw_prng=use_hw_prng)

    call_kwargs = {}
    if use_hw_prng:
        # Elementwise + per-tile seeding -> grid axis is embarrassingly
        # parallel; on v7x this shards tiles across both TensorCores.
        call_kwargs["compiler_params"] = pltpu.CompilerParams(
            dimension_semantics=("parallel",))

    out2d = pl.pallas_call(
        kernel,
        out_shape=jax.ShapeDtypeStruct((rows, cols), x.dtype),
        grid=grid,
        in_specs=[
            pl.BlockSpec(memory_space=pltpu.MemorySpace.SMEM),   # seed scalar
            pl.BlockSpec((block_rows, cols), lambda i: (i, 0)),  # x tile
        ],
        out_specs=pl.BlockSpec((block_rows, cols), lambda i: (i, 0)),
        input_output_aliases={1: 0},  # write the noisy result in place
        **call_kwargs,
    )(seed_arr, x2d)

    return out2d.reshape(orig_shape)


if __name__ == "__main__":
    key = jax.random.PRNGKey(0)
    x = jax.random.normal(key, (2, 4, 16, 16), dtype=jnp.float32)

    out = jax.block_until_ready(
        gaussian_noise(x, seed=0, sigma=SIGMA, training=True))

    # Sanity checks: shape/dtype preserved; noise is finite, nonzero, and
    # strictly relative to |x| (|z| <= sqrt(2*24*ln 2) ~ 5.77 by construction).
    assert out.shape == x.shape and out.dtype == x.dtype
    assert bool(jnp.all(jnp.isfinite(out)))
    rel = jnp.abs(out - x) / (jnp.abs(x) + 1e-12)
    assert float(jnp.max(rel)) < 8.0 * SIGMA + 1e-3
    assert float(jnp.max(jnp.abs(out - x))) > 0.0

    # Eval mode (or sigma == 0) must be the identity.
    out_eval = jax.block_until_ready(gaussian_noise(x, seed=0, training=False))
    assert bool(jnp.all(out_eval == x))

    print("KERNEL_OK")
</pallas_src>

<mosaic_0001>
module attributes {stable_mosaic.version = 11 : i64} {
  func.func @_gaussian_noise_kernel(%arg0: i32, %arg1: memref<1xi32, #tpu.memory_space<smem>>, %arg2: memref<8x256xf32, #tpu.memory_space<vmem>>, %arg3: memref<8x256xf32, #tpu.memory_space<vmem>>) attributes {dimension_semantics = [#tpu.dimension_semantics<arbitrary>], iteration_bounds = array<i64: 1>, scalar_prefetch = 0 : i64, scratch_operands = 0 : i64, tpu.core_type = #tpu.core_type<tc>, window_params = [{transform_indices = @transform_0, window_bounds = array<i64: 1>}, {transform_indices = @transform_1, window_bounds = array<i64: 8, 256>}, {transform_indices = @transform_2, window_bounds = array<i64: 8, 256>}]} {
    %c0 = arith.constant 0 : index
    %0 = memref.load %arg1[%c0] : memref<1xi32, #tpu.memory_space<smem>>
    %1 = tpu.iota {dimensions = array<i32: 0>} : vector<8x128xi32>
    %2 = tpu.iota {dimensions = array<i32: 1>} : vector<8x128xi32>
    %c8_i32 = arith.constant 8 : i32
    %3 = arith.muli %arg0, %c8_i32 : i32
    %4 = vector.broadcast %3 : i32 to vector<8x128xi32>
    %5 = arith.addi %1, %4 : vector<8x128xi32>
    %c128_i32 = arith.constant 128 : i32
    %6 = vector.broadcast %c128_i32 : i32 to vector<8x128xi32>
    %7 = arith.muli %5, %6 : vector<8x128xi32>
    %8 = arith.addi %7, %2 : vector<8x128xi32>
    %c2_i32 = arith.constant 2 : i32
    %9 = vector.broadcast %c2_i32 : i32 to vector<8x128xi32>
    %10 = arith.muli %8, %9 : vector<8x128xi32>
    %c-1640531527_i32 = arith.constant -1640531527 : i32
    %11 = arith.muli %0, %c-1640531527_i32 : i32
    %12 = vector.broadcast %11 : i32 to vector<8x128xi32>
    %13 = arith.addi %10, %12 : vector<8x128xi32>
    %c16_i32 = arith.constant 16 : i32
    %14 = vector.broadcast %c16_i32 : i32 to vector<8x128xi32>
    %15 = arith.shrui %13, %14 : vector<8x128xi32>
    %16 = arith.xori %13, %15 : vector<8x128xi32>
    %c2146121005_i32 = arith.constant 2146121005 : i32
    %17 = vector.broadcast %c2146121005_i32 : i32 to vector<8x128xi32>
    %18 = arith.muli %16, %17 : vector<8x128xi32>
    %c15_i32 = arith.constant 15 : i32
    %19 = vector.broadcast %c15_i32 : i32 to vector<8x128xi32>
    %20 = arith.shrui %18, %19 : vector<8x128xi32>
    %21 = arith.xori %18, %20 : vector<8x128xi32>
    %c-2073254261_i32 = arith.constant -2073254261 : i32
    %22 = vector.broadcast %c-2073254261_i32 : i32 to vector<8x128xi32>
    %23 = arith.muli %21, %22 : vector<8x128xi32>
    %c16_i32_0 = arith.constant 16 : i32
    %24 = vector.broadcast %c16_i32_0 : i32 to vector<8x128xi32>
    %25 = arith.shrui %23, %24 : vector<8x128xi32>
    %26 = arith.xori %23, %25 : vector<8x128xi32>
    %c1_i32 = arith.constant 1 : i32
    %27 = vector.broadcast %c1_i32 : i32 to vector<8x128xi32>
    %28 = arith.addi %13, %27 : vector<8x128xi32>
    %c16_i32_1 = arith.constant 16 : i32
    %29 = vector.broadcast %c16_i32_1 : i32 to vector<8x128xi32>
    %30 = arith.shrui %28, %29 : vector<8x128xi32>
    %31 = arith.xori %28, %30 : vector<8x128xi32>
    %c2146121005_i32_2 = arith.constant 2146121005 : i32
    %32 = vector.broadcast %c2146121005_i32_2 : i32 to vector<8x128xi32>
    %33 = arith.muli %31, %32 : vector<8x128xi32>
    %c15_i32_3 = arith.constant 15 : i32
    %34 = vector.broadcast %c15_i32_3 : i32 to vector<8x128xi32>
    %35 = arith.shrui %33, %34 : vector<8x128xi32>
    %36 = arith.xori %33, %35 : vector<8x128xi32>
    %c-2073254261_i32_4 = arith.constant -2073254261 : i32
    %37 = vector.broadcast %c-2073254261_i32_4 : i32 to vector<8x128xi32>
    %38 = arith.muli %36, %37 : vector<8x128xi32>
    %c16_i32_5 = arith.constant 16 : i32
    %39 = vector.broadcast %c16_i32_5 : i32 to vector<8x128xi32>
    %40 = arith.shrui %38, %39 : vector<8x128xi32>
    %41 = arith.xori %38, %40 : vector<8x128xi32>
    %c16777215_i32 = arith.constant 16777215 : i32
    %42 = vector.broadcast %c16777215_i32 : i32 to vector<8x128xi32>
    %43 = arith.andi %26, %42 : vector<8x128xi32>
    %44 = arith.sitofp %43 : vector<8x128xi32> to vector<8x128xf32>
    %c16777215_i32_6 = arith.constant 16777215 : i32
    %45 = vector.broadcast %c16777215_i32_6 : i32 to vector<8x128xi32>
    %46 = arith.andi %41, %45 : vector<8x128xi32>
    %47 = arith.sitofp %46 : vector<8x128xi32> to vector<8x128xf32>
    %cst = arith.constant 1.000000e+00 : f32
    %48 = vector.broadcast %cst : f32 to vector<8x128xf32>
    %49 = arith.addf %44, %48 : vector<8x128xf32>
    %cst_7 = arith.constant 5.96046448E-8 : f32
    %50 = vector.broadcast %cst_7 : f32 to vector<8x128xf32>
    %51 = arith.mulf %49, %50 : vector<8x128xf32>
    %52 = math.log %51 : vector<8x128xf32>
    %cst_8 = arith.constant -2.000000e+00 : f32
    %53 = vector.broadcast %cst_8 : f32 to vector<8x128xf32>
    %54 = arith.mulf %53, %52 : vector<8x128xf32>
    %55 = math.sqrt %54 : vector<8x128xf32>
    %cst_9 = arith.constant 3.74507039E-7 : f32
    %56 = vector.broadcast %cst_9 : f32 to vector<8x128xf32>
    %57 = arith.mulf %56, %47 : vector<8x128xf32>
    %58 = math.cos %57 : vector<8x128xf32>
    %59 = arith.mulf %55, %58 : vector<8x128xf32>
    %60 = math.sin %57 : vector<8x128xf32>
    %61 = arith.mulf %55, %60 : vector<8x128xf32>
    %62 = tpu.concatenate %59, %61 in 1 : vector<8x128xf32>, vector<8x128xf32> -> vector<8x256xf32>
    %c0_10 = arith.constant 0 : index
    %c0_11 = arith.constant 0 : index
    %63 = vector.load %arg2[%c0_10, %c0_11] : memref<8x256xf32, #tpu.memory_space<vmem>>, vector<8x256xf32>
    %cst_12 = arith.constant 1.000000e-01 : f32
    %64 = vector.broadcast %cst_12 : f32 to vector<8x256xf32>
    %65 = arith.mulf %64, %62 : vector<8x256xf32>
    %cst_13 = arith.constant 1.000000e+00 : f32
    %66 = vector.broadcast %cst_13 : f32 to vector<8x256xf32>
    %67 = arith.addf %66, %65 : vector<8x256xf32>
    %68 = arith.mulf %63, %67 : vector<8x256xf32>
    %c0_14 = arith.constant 0 : index
    %c0_15 = arith.constant 0 : index
    %69 = vector.load %arg3[%c0_14, %c0_15] : memref<8x256xf32, #tpu.memory_space<vmem>>, vector<8x256xf32>
    tpu.vector_store %arg3[%c0_14, %c0_15], %68 {strides = array<i32>} : memref<8x256xf32, #tpu.memory_space<vmem>>, vector<8x256xf32>,
    return
  }
  func.func @transform_0(%arg0: i32) -> i32 {
    %c0_i32 = arith.constant 0 : i32
    %c0_i32_0 = arith.constant 0 : i32
    return %c0_i32 : i32
  }
  func.func @transform_1(%arg0: i32) -> (i32, i32) {
    %c0_i32 = arith.constant 0 : i32
    %c0_i32_0 = arith.constant 0 : i32
    return %arg0, %c0_i32 : i32, i32
  }
  func.func @transform_2(%arg0: i32) -> (i32, i32) {
    %c0_i32 = arith.constant 0 : i32
    %c0_i32_0 = arith.constant 0 : i32
    return %arg0, %c0_i32 : i32, i32
  }
}

</mosaic_0001>

<llo_original>
// kernel: tpu_custom_call.1
$region0: #{tpu_custom_call.1}
  #allocation0 [shape = 'u32[]', space=smem, size = 0x4, offset = 0x4, fixed_abs, tag = 'smem constant byte address 0x4 - core index']
  #allocation1 [shape = 'u32[144,128]{1,0:T(1,128)}', space=vmem, size = 0x12000, scoped, tag = 'internal scratch']
  #allocation2 [shape = 's32[1]{0:T(128)S(6)}', space=smem, size = 0x200, scoped, tag = 'scoped memory for tpu_custom_call.1']
  %s0 = inlined_call_operand.<no memory space> [shape: s32[1], index: 0, kind: input, shape index: {}]
  %s1 = inlined_call_operand.hbm [shape: f32[8,256], index: 1, kind: input, shape index: {}, may-alias: {1,2}]
  %s2 = inlined_call_operand.hbm [shape: f32[8,256], index: 2, kind: output, shape index: {}, may-alias: {1,2}]
  %s3 = sld [smem:[#allocation0]]
  $region22: #{tpu_custom_call.1} parent=0
    _
  %s5 = ssub.s32 1, %s3
  %s6 = scalar_select 0, %s5, %s3
  %7 = sst [smem:[#allocation2]] %s0
  $region1: #{tpu_custom_call.1} parent=0
    #allocation3 [shape = 'u8[8192]{0}', space=vmem, size = 0x2000, scoped, tag = 'input window, operand 1, single buffered']
    #allocation4 [shape = 's32[1]{0}', space=sflag, size = 0x4, scoped, tag = 'scoped memory for tpu_custom_call.1']
    #allocation5 [shape = 's32[1]{0}', space=sflag, size = 0x4, scoped, tag = 'scoped memory for tpu_custom_call.1']
    #allocation6 [shape = 'u8[8192]{0}', space=vmem, size = 0x2000, scoped, tag = 'output window, operand 0, single buffered']
    %8 = vsyncpa [#allocation4], 0
    %9 = vsyncpa [#allocation5], 0
    // Predicated region
    $region2: #{tpu_custom_call.1} parent=1 // pred_check
      _
    $region3: #{tpu_custom_call.1} parent=1 // pred_check_branch
      %11 = sbr.rel (0) target = $region5
    $region4: #{tpu_custom_call.1} parent=1 // pred_region
      _
    $region5: #{tpu_custom_call.1} parent=1 // pred_fallthru
      _
    // Predicated region
    $region6: #{tpu_custom_call.1} parent=1 // pred_check
      _
    $region7: #{tpu_custom_call.1} parent=1 // pred_check_branch
      %13 = sbr.rel (0) target = $region9
    $region8: #{tpu_custom_call.1} parent=1 // pred_region
      %s15 = ssub.s32 256, 256
      %16 = vsyncadd [#allocation4], %s15
      %s18 = sshll.u32 [#allocation3], 4
      %s19 = int_to_ptr.vmem [resolvable:$true] %s18
      %21 = dma.hbm_to_vmem [thread:$0]  %s1, 256, %s19, [#allocation4]
    $region9: #{tpu_custom_call.1} parent=1 // pred_fallthru
      _
    // Predicated region
    $region10: #{tpu_custom_call.1} parent=1 // pred_check
      _
    $region11: #{tpu_custom_call.1} parent=1 // pred_check_branch
      %23 = sbr.rel (0) target = $region13
    $region12: #{tpu_custom_call.1} parent=1 // pred_region
      %24 = dma.done [#allocation4], 256
    $region13: #{tpu_custom_call.1} parent=1 // pred_fallthru
      _
    %s25 = sld [smem:[#allocation2]]
    %v26 = vlaneseq
    %v27 = vshrl.u32 %v26, 7
    %v28 = vlaneseq
    %v29 = vand.u32 %v28, 127
    %s30 = smul.u32 0, 8
    %v31 = vstv %s30
    %v32 = vadd.s32 %v27, %v31
    %v33 = vmul.u32 %v32, 128
    %v34 = vadd.s32 %v33, %v29
    %v35 = vmul.u32 %v34, 2
    %s36 = smul.u32 %s25, 2654435769
    %v37 = vstv %s36
    %v38 = vadd.s32 %v35, %v37
    %v39 = vshrl.u32 %v38, 16
    %v40 = vxor.u32 %v38, %v39
    %v41 = vmul.u32 %v40, 2146121005
    %v42 = vshrl.u32 %v41, 15
    %v43 = vxor.u32 %v41, %v42
    %v44 = vmul.u32 %v43, 2221713035
    %v45 = vshrl.u32 %v44, 16
    %v46 = vxor.u32 %v44, %v45
    %v47 = vadd.s32 %v38, 1
    %v48 = vshrl.u32 %v47, 16
    %v49 = vxor.u32 %v47, %v48
    %v50 = vmul.u32 %v49, 2146121005
    %v51 = vshrl.u32 %v50, 15
    %v52 = vxor.u32 %v50, %v51
    %v53 = vmul.u32 %v52, 2221713035
    %v54 = vshrl.u32 %v53, 16
    %v55 = vxor.u32 %v53, %v54
    %v56 = vand.u32 %v46, 16777215
    %v57 = vcvt.s32.f32 %v56
    %v58 = vand.u32 %v55, 16777215
    %v59 = vcvt.s32.f32 %v58
    %v60 = vadd.f32 %v57, 1.0
    %v61 = vmul.f32 %v60, 5.9604645e-08
    %v62 = vlog2.pop %v61
    %v63 = vmul.f32 %v62, 0.6931472
    %v64 = vmul.f32 %v63, -2.0
    %v65 = vrsqrt.pop %v64
    %v66 = vmul.f32 %v64, %v65
    %vm67 = vcmp.eq.f32.partialorder %v64, inf
    %v68 = vsel %vm67, %v64, %v66
    %vm69 = vcmp.eq.f32.partialorder %v64, 0.0
    %v70 = vand.u32 %v64, 2147483648
    %v71 = vsel %vm69, %v70, %v68
    %v72 = vmul.f32 %v59, 3.7450704e-07
    %v73 = vand.u32 2147483647, %v72
    %vm74 = vcmp.le.f32.partialorder %v73, 0.7853982
    %vm75 = vcmp.lt.s32.totalorder %v72, 0
    %v76 = vand.u32 %v72, 2139095040
    %v77 = vshrl.u32 %v76, 23
    %v78 = vsub.s32 %v77, 127
    %v79 = vand.u32 2147483647, %v72
    %v80 = vand.u32 %v79, 8388607
    %v81 = vor.u32 %v80, 8388608
    %v82 = vsub.s32 0, %v81
    %v83 = vadd.s32 %v78, 1
    %vm84 = vcmp.gt.s32.totalorder %v83, 0
    %v85 = vsel %vm84, %v83, 0
    %v86 = vshrl.u32 %v85, 5
    %v87 = vand.u32 %v85, 31
    %v88 = vsub.s32 32, %v87
    %v89 = vshrl.u32 683565275, %v88
    %v90 = vshll.u32 683565275, %v87
    %v91 = vshrl.u32 2475754826, %v88
    %v92 = vor.u32 %v90, %v91
    %v93 = vshll.u32 2475754826, %v87
    %v94 = vshrl.u32 2131351028, %v88
    %v95 = vor.u32 %v93, %v94
    %v96 = vshll.u32 2131351028, %v87
    %v97 = vshrl.u32 2102212464, %v88
    %v98 = vor.u32 %v96, %v97
    %v99 = vshll.u32 2102212464, %v87
    %v100 = vshrl.u32 920167782, %v88
    %v101 = vor.u32 %v99, %v100
    %v102 = vshll.u32 920167782, %v87
    %v103 = vshrl.u32 1326507024, %v88
    %v104 = vor.u32 %v102, %v103
    %vm105 = vcmp.lt.s32.totalorder %v86, 1
    %vm106 = vcmp.lt.s32.totalorder %v86, 2
    %vm107 = vcmp.lt.s32.totalorder %v86, 3
    %vm108 = vcmp.lt.s32.totalorder %v86, 4
    %v109 = vsel %vm105, %v89, %v92
    %v110 = vsel %vm108, %v98, 2102212464
    %v111 = vsel %vm107, %v95, %v110
    %v112 = vsel %vm106, %v109, %v111
    %v113 = vsel %vm105, %v92, %v95
    %v114 = vsel %vm108, %v101, 920167782
    %v115 = vsel %vm107, %v98, %v114
    %v116 = vsel %vm106, %v113, %v115
    %v117 = vsel %vm105, %v95, %v98
    %v118 = vsel %vm108, %v104, 1326507024
    %v119 = vsel %vm107, %v101, %v118
    %v120 = vsel %vm106, %v117, %v119
    %v121 = vshll.u32 %v81, 8
    %v122 = vmul.u32.u64.compose %v121, %v120
    %v123 = vextract.low.u32 %v122
    %v124 = vextract.high.u32 %v122
    %v125 = vmul.u32.u64.compose %v121, %v116
    %v126 = vextract.low.u32 %v125
    %v127 = vextract.high.u32 %v125
    %v128 = vmul.u32 %v121, %v112
    %v129 = vadd.s32 %v124, %v126
    %vm130 = vc.u32 %v124, %v126
    %v131 = vadd.s32 %v127, 1
    %v132 = vsel %vm130, %v131, %v127
    %v133 = vadd.s32 %v128, %v132
    %v134 = vadd.s32 %v133, 536870912
    %v135 = vshrl.u32 %v134, 30
    %v136 = vshll.u32 %v135, 30
    %v137 = vsub.s32 %v133, %v136
    %vm138 = vcmp.lt.s32.totalorder %v137, 0
    %v139 = vsub.s32 0, %v137
    %v140 = vsel %vm138, %v139, %v137
    %v141 = vclz %v140
    %v142 = vsub.s32 %v141, 2
    %vm143 = vcmp.gt.s32.totalorder 0, %v142
    %v144 = vsel %vm143, 0, %v142
    %v145 = vsub.s32 32, %v144
    %v146 = vshll.u32 %v137, %v144
    %v147 = vshrl.u32 %v129, %v145
    %v148 = vor.u32 %v146, %v147
    %v149 = vsub.s32 4294967266, %v144
    %v150 = vadd.s32 %v149, 127
    %v151 = vshll.u32 %v150, 23
    %v152 = vor.u32 4788187, %v151
    %v153 = vand.u32 2147483647, %v152
    %v155 = vcvt.s32.f32 %v148
    %v156 = vmul.f32 %v155, %v153
    %v157 = vxor.u32 %v156, 2147483648
    %v158 = vsel %vm75, %v157, %v156
    %v159 = vsub.s32 4, %v135
    %v160 = vsel %vm75, %v159, %v135
    %v161 = vsel %vm74, %v72, %v158
    %v162 = vsel %vm74, 0, %v160
    %v163 = vcosq.f32.pop %v161
    %v164 = vsinq.f32.pop %v161
    %vm165 = vweird.f32 %v72
    %v166 = vand.u32 %v162, 3
    %vm167 = vcmp.lt.s32.totalorder %v166, 2
    %vm168 = vcmp.eq.s32.totalorder %v166, 0
    %v169 = vxor.u32 %v164, 2147483648
    %v170 = vsel %vm168, %v163, %v169
    %vm171 = vcmp.eq.s32.totalorder %v166, 2
    %v172 = vxor.u32 %v163, 2147483648
    %v173 = vsel %vm171, %v172, %v164
    %v174 = vsel %vm167, %v170, %v173
    %v175 = vsel %vm165, nan, %v174
    %v176 = vmul.f32 %v71, %v175
    %v177 = vand.u32 2147483647, %v72
    %vm178 = vcmp.le.f32.partialorder %v177, 0.7853982
    %vm179 = vcmp.lt.s32.totalorder %v72, 0
    %v180 = vand.u32 %v72, 2139095040
    %v181 = vshrl.u32 %v180, 23
    %v182 = vsub.s32 %v181, 127
    %v183 = vand.u32 2147483647, %v72
    %v184 = vand.u32 %v183, 8388607
    %v185 = vor.u32 %v184, 8388608
    %v186 = vsub.s32 0, %v185
    %v187 = vadd.s32 %v182, 1
    %vm188 = vcmp.gt.s32.totalorder %v187, 0
    %v189 = vsel %vm188, %v187, 0
    %v190 = vshrl.u32 %v189, 5
    %v191 = vand.u32 %v189, 31
    %v192 = vsub.s32 32, %v191
    %v193 = vshrl.u32 683565275, %v192
    %v194 = vshll.u32 683565275, %v191
    %v195 = vshrl.u32 2475754826, %v192
    %v196 = vor.u32 %v194, %v195
    %v197 = vshll.u32 2475754826, %v191
    %v198 = vshrl.u32 2131351028, %v192
    %v199 = vor.u32 %v197, %v198
    %v200 = vshll.u32 2131351028, %v191
    %v201 = vshrl.u32 2102212464, %v192
    %v202 = vor.u32 %v200, %v201
    %v203 = vshll.u32 2102212464, %v191
    %v204 = vshrl.u32 920167782, %v192
    %v205 = vor.u32 %v203, %v204
    %v206 = vshll.u32 920167782, %v191
    %v207 = vshrl.u32 1326507024, %v192
    %v208 = vor.u32 %v206, %v207
    %vm209 = vcmp.lt.s32.totalorder %v190, 1
    %vm210 = vcmp.lt.s32.totalorder %v190, 2
    %vm211 = vcmp.lt.s32.totalorder %v190, 3
    %vm212 = vcmp.lt.s32.totalorder %v190, 4
    %v213 = vsel %vm209, %v193, %v196
    %v214 = vsel %vm212, %v202, 2102212464
    %v215 = vsel %vm211, %v199, %v214
    %v216 = vsel %vm210, %v213, %v215
    %v217 = vsel %vm209, %v196, %v199
    %v218 = vsel %vm212, %v205, 920167782
    %v219 = vsel %vm211, %v202, %v218
    %v220 = vsel %vm210, %v217, %v219
    %v221 = vsel %vm209, %v199, %v202
    %v222 = vsel %vm212, %v208, 1326507024
    %v223 = vsel %vm211, %v205, %v222
    %v224 = vsel %vm210, %v221, %v223
    %v225 = vshll.u32 %v185, 8
    %v226 = vmul.u32.u64.compose %v225, %v224
    %v227 = vextract.low.u32 %v226
    %v228 = vextract.high.u32 %v226
    %v229 = vmul.u32.u64.compose %v225, %v220
    %v230 = vextract.low.u32 %v229
    %v231 = vextract.high.u32 %v229
    %v232 = vmul.u32 %v225, %v216
    %v233 = vadd.s32 %v228, %v230
    %vm234 = vc.u32 %v228, %v230
    %v235 = vadd.s32 %v231, 1
    %v236 = vsel %vm234, %v235, %v231
    %v237 = vadd.s32 %v232, %v236
    %v238 = vadd.s32 %v237, 536870912
    %v239 = vshrl.u32 %v238, 30
    %v240 = vshll.u32 %v239, 30
    %v241 = vsub.s32 %v237, %v240
    %vm242 = vcmp.lt.s32.totalorder %v241, 0
    %v243 = vsub.s32 0, %v241
    %v244 = vsel %vm242, %v243, %v241
    %v245 = vclz %v244
    %v246 = vsub.s32 %v245, 2
    %vm247 = vcmp.gt.s32.totalorder 0, %v246
    %v248 = vsel %vm247, 0, %v246
    %v249 = vsub.s32 32, %v248
    %v250 = vshll.u32 %v241, %v248
    %v251 = vshrl.u32 %v233, %v249
    %v252 = vor.u32 %v250, %v251
    %v253 = vsub.s32 4294967266, %v248
    %v254 = vadd.s32 %v253, 127
    %v255 = vshll.u32 %v254, 23
    %v256 = vor.u32 4788187, %v255
    %v257 = vand.u32 2147483647, %v256
    %v259 = vcvt.s32.f32 %v252
    %v260 = vmul.f32 %v259, %v257
    %v261 = vxor.u32 %v260, 2147483648
    %v262 = vsel %vm179, %v261, %v260
    %v263 = vsub.s32 4, %v239
    %v264 = vsel %vm179, %v263, %v239
    %v265 = vsel %vm178, %v72, %v262
    %v266 = vsel %vm178, 0, %v264
    %v267 = vcosq.f32.pop %v265
    %v268 = vsinq.f32.pop %v265
    %vm269 = vweird.f32 %v72
    %v270 = vadd.s32 %v266, 3
    %v271 = vand.u32 %v270, 3
    %vm272 = vcmp.lt.s32.totalorder %v271, 2
    %vm273 = vcmp.eq.s32.totalorder %v271, 0
    %v274 = vxor.u32 %v268, 2147483648
    %v275 = vsel %vm273, %v267, %v274
    %vm276 = vcmp.eq.s32.totalorder %v271, 2
    %v277 = vxor.u32 %v267, 2147483648
    %v278 = vsel %vm276, %v277, %v268
    %v279 = vsel %vm272, %v275, %v278
    %v280 = vsel %vm269, nan, %v279
    %v281 = vmul.f32 %v71, %v280
    %v282 = vld [vmem:[#allocation3] sm:$0xff]
    %v283 = vld [vmem:[#allocation3 + $0x8] sm:$0xff]
    %v284 = vmul.f32 %v176, 0.1
    %v285 = vmul.f32 %v281, 0.1
    %v286 = vadd.f32 %v284, 1.0
    %v287 = vadd.f32 %v285, 1.0
    %v288 = vmul.f32 %v282, %v286
    %v289 = vmul.f32 %v283, %v287
    %290 = vst [vmem:[#allocation6] sm:$0xff] %v288
    %291 = vst [vmem:[#allocation6 + $0x8] sm:$0xff] %v289
    // Predicated region
    $region14: #{tpu_custom_call.1} parent=1 // pred_check
      _
    $region15: #{tpu_custom_call.1} parent=1 // pred_check_branch
      %293 = sbr.rel (0) target = $region17
    $region16: #{tpu_custom_call.1} parent=1 // pred_region
      %s295 = ssub.s32 256, 256
      %296 = vsyncadd [#allocation5], %s295
      %s298 = sshll.u32 [#allocation6], 4
      %s299 = int_to_ptr.vmem [resolvable:$true] %s298
      %301 = dma.vmem_to_hbm [thread:$0]  %s299, 256, %s2, [#allocation5]
    $region17: #{tpu_custom_call.1} parent=1 // pred_fallthru
      _
    // Predicated region
    $region18: #{tpu_custom_call.1} parent=1 // pred_check
      _
    $region19: #{tpu_custom_call.1} parent=1 // pred_check_branch
      %303 = sbr.rel (0) target = $region21
    $region20: #{tpu_custom_call.1} parent=1 // pred_region
      %304 = dma.done [#allocation5], 256
    $region21: #{tpu_custom_call.1} parent=1 // pred_fallthru
      _
    %305 = vsyncpa [#allocation4], 1
    %306 = vsyncpa [#allocation5], 1

</llo_original>
